<compile_context>
chip_gen: v5e
topology: v5e:2x2
jax: 0.10.0
libtpu: 0.0.40
codegen_flags: <defaults>
</compile_context>

<pallas_src>
import functools
import math

import jax
import jax.numpy as jnp
from jax.experimental import pallas as pl
from jax.experimental.pallas import tpu as pltpu


# ----------------------------------------------------------------------------
# Kernel body: one (tm, width) row slab, loop over weight groups.
# ----------------------------------------------------------------------------
def _bdl_kernel(x_ref, w_ref, b_ref, o_ref, *, n_groups, gw):
    # x_ref: (tm, width)   w_ref: (n_groups, gw, gw)   b_ref: (n_groups, gw) f32
    # o_ref: (tm, width)   width == n_groups * gw
    for g in range(n_groups):                      # static unrolled group loop
        lo = g * gw
        y = jnp.dot(x_ref[:, lo:lo + gw], w_ref[g],
                    preferred_element_type=jnp.float32)
        y = y + b_ref[g:g + 1, :]                  # bias already f32
        o_ref[:, lo:lo + gw] = y.astype(o_ref.dtype)


# ----------------------------------------------------------------------------
# Generation-aware sizing helpers.
# ----------------------------------------------------------------------------
@functools.lru_cache(maxsize=None)
def _default_lane_target() -> int:
    """256-wide groups for the 256x256 MXUs (v6e/v7x); 128 for older parts."""
    try:
        kind = jax.devices()[0].device_kind.lower()
    except Exception:
        return 256
    if any(t in kind for t in ("v2", "v3", "v4", "v5")):
        return 128
    return 256


@functools.lru_cache(maxsize=None)
def _vmem_limit_bytes() -> int:
    """Single number used both for the tile budget and vmem_limit_bytes."""
    cap = None
    try:
        cap = getattr(pltpu.get_tpu_info(), "vmem_capacity_bytes", None)
    except Exception:
        cap = None
    if cap is None:
        cap = 64 * 1024 * 1024                     # conservative: v7x-sized VMEM
    if cap <= 64 * 1024 * 1024:
        return 48 * 1024 * 1024                    # v7x (64 MiB physical / TC)
    return 96 * 1024 * 1024                        # v5e / v6e (128 MiB physical)


def _pick_group(num_blocks: int, bw: int, lane_target: int) -> int:
    """Smallest divisor g of num_blocks with (g*bw) % lane_target == 0
    (then % 128); guarded fallback keeps gw <= 512 instead of going dense."""
    for tgt in sorted({lane_target, 128}, reverse=True):
        for g in range(1, num_blocks + 1):
            if num_blocks % g == 0 and (g * bw) % tgt == 0:
                return g
    best = 1
    for g in range(1, num_blocks + 1):
        if num_blocks % g == 0 and g * bw <= 512:
            best = g
    return best


def _pick_tm(m, width, x_item, out_item, weight_bytes, budget) -> int:
    """Largest row tile (<=8192, multiple of 8) fitting double-buffered
    x/out tiles plus the resident grouped weights in the VMEM budget."""
    fixed = 2 * weight_bytes                       # weights/bias (2 buffers, conservative)
    per_row = 2 * width * (x_item + out_item)      # 2 bufs * (x row + out row)
    tm_max = (budget - fixed) // max(per_row, 1)
    tm = min(m, 8192, max(int(tm_max), 8))
    if tm < m:
        tm = max(8, (tm // 8) * 8)                 # sublane rule for partial blocks
    return tm


# ----------------------------------------------------------------------------
# Parameter packing (run once at load time, not per forward).
# ----------------------------------------------------------------------------
def prepare_block_diagonal_params(w, b, *, param_dtype=None, lane_target=None):
    """Pack (num_blocks, bw, bw) weights into a lane-dense grouped
    block-diagonal (n_groups, gw, gw) array and a (n_groups, gw) f32 bias."""
    num_blocks, bw, bw2 = w.shape
    assert bw == bw2, "weight blocks must be square"
    if param_dtype is not None:
        w = w.astype(param_dtype)
    if lane_target is None:
        lane_target = _default_lane_target()
    G = _pick_group(num_blocks, bw, lane_target)
    n_groups = num_blocks // G
    gw = G * bw
    eye = jnp.eye(G, dtype=w.dtype)
    wd = jnp.einsum("ngij,gh->ngihj", w.reshape(n_groups, G, bw, bw), eye)
    wd = wd.reshape(n_groups, gw, gw)
    bg = b.reshape(n_groups, gw).astype(jnp.float32)
    return wd, bg


# ----------------------------------------------------------------------------
# Forward pass.
# ----------------------------------------------------------------------------
@jax.jit
def block_diagonal_linear_apply(x, wd, bg):
    """y[..., h*bw:(h+1)*bw] = x[..., h*bw:(h+1)*bw] @ w[h] + b[h],
    with (wd, bg) produced by prepare_block_diagonal_params."""
    n_groups, gw, _ = wd.shape
    width = x.shape[-1]
    assert width == n_groups * gw, "x width must match packed weights"

    lead = x.shape[:-1]
    m = math.prod(lead) if lead else 1
    x2 = x.reshape(m, width)                       # flat reshape, no HBM transpose
    out_dtype = x.dtype

    vmem_limit = _vmem_limit_bytes()
    weight_bytes = wd.size * wd.dtype.itemsize + bg.size * bg.dtype.itemsize
    tm = _pick_tm(m, width, x2.dtype.itemsize, jnp.dtype(out_dtype).itemsize,
                  weight_bytes, vmem_limit - 4 * 1024 * 1024)
    m_tiles = pl.cdiv(m, tm)

    kernel = functools.partial(_bdl_kernel, n_groups=n_groups, gw=gw)
    cost = pl.CostEstimate(
        flops=2 * m * width * gw + m * width,
        transcendentals=0,
        bytes_accessed=m * width * (x2.dtype.itemsize
                                    + jnp.dtype(out_dtype).itemsize)
        + weight_bytes,
    )

    out = pl.pallas_call(
        kernel,
        out_shape=jax.ShapeDtypeStruct((m, width), out_dtype),
        grid_spec=pltpu.PrefetchScalarGridSpec(
            num_scalar_prefetch=0,
            grid=(m_tiles,),                       # single, evenly-split parallel axis
            in_specs=[
                # Full-width row slab: contiguous HBM bursts, x read once.
                pl.BlockSpec((tm, width), lambda i: (i, 0)),
                # Grouped weights: constant index -> VMEM-resident across the grid.
                pl.BlockSpec((n_groups, gw, gw), lambda i: (0, 0, 0)),
                pl.BlockSpec((n_groups, gw), lambda i: (0, 0)),
            ],
            out_specs=pl.BlockSpec((tm, width), lambda i: (i, 0)),
        ),
        compiler_params=pltpu.CompilerParams(
            dimension_semantics=("parallel",),
            vmem_limit_bytes=vmem_limit,
        ),
        cost_estimate=cost,
        # Default depth-2 pipelining hides HBM latency with these contiguous
        # full-width tiles; sweep pl.Buffered(3) only if a profile shows
        # exposed DMA.
    )(x2, wd, bg)

    return out.reshape(*lead, width)


def block_diagonal_linear(x, w, b, *, num_blocks=None, param_dtype=None):
    """One-shot convenience wrapper; prefer prepare + apply for repeated use."""
    del num_blocks  # implied by w.shape[0]
    wd, bg = prepare_block_diagonal_params(w, b, param_dtype=param_dtype)
    return block_diagonal_linear_apply(x, wd, bg)


# ----------------------------------------------------------------------------
# Reference + demo.
# ----------------------------------------------------------------------------
def _reference(x, w, b, num_blocks):
    bw = x.shape[-1] // num_blocks
    xb = x.reshape(*x.shape[:-1], num_blocks, bw)
    y = jnp.einsum("...hi,hij->...hj", xb, w,
                   precision=jax.lax.Precision.HIGHEST) + b
    return y.reshape(*x.shape[:-1], num_blocks * bw)


if __name__ == "__main__":
    # Small shapes implied by the forward: x is [..., width].
    batch, seq, width, num_blocks = 2, 8, 32, 4
    bw = width // num_blocks

    key = jax.random.PRNGKey(0)
    kx, kw = jax.random.split(key)

    # Parameter init matching reset_parameters(): w ~ N(0, 1/bw), b = 0.
    std = math.sqrt(1.0 / bw)
    x32 = jax.random.normal(kx, (batch, seq, width), dtype=jnp.float32)
    w32 = std * jax.random.normal(kw, (num_blocks, bw, bw), dtype=jnp.float32)
    b32 = jnp.zeros((num_blocks, bw), dtype=jnp.float32)

    # --- f32 path (the PyTorch module's default dtype) ----------------------
    wd, bg = prepare_block_diagonal_params(w32, b32)
    y = jax.block_until_ready(block_diagonal_linear_apply(x32, wd, bg))
    y_ref = _reference(x32, w32, b32, num_blocks)
    assert y.shape == (batch, seq, width) and y.dtype == x32.dtype
    assert jnp.allclose(y, y_ref, atol=3e-2, rtol=3e-2), "f32 mismatch vs reference"

    # --- bf16 fast path (production dtype: half the HBM traffic) ------------
    x16 = x32.astype(jnp.bfloat16)
    w16 = w32.astype(jnp.bfloat16)
    wd16, bg16 = prepare_block_diagonal_params(w16, b32)
    y16 = jax.block_until_ready(block_diagonal_linear_apply(x16, wd16, bg16))
    y16_ref = _reference(x16.astype(jnp.float32), w16.astype(jnp.float32),
                         b32, num_blocks)
    assert y16.shape == (batch, seq, width) and y16.dtype == jnp.bfloat16
    assert jnp.allclose(y16.astype(jnp.float32), y16_ref, atol=5e-2, rtol=5e-2), \
        "bf16 mismatch vs reference"

    print("KERNEL_OK")
</pallas_src>

<mosaic_0001>
module attributes {stable_mosaic.version = 11 : i64} {
  func.func @_bdl_kernel(%arg0: i32, %arg1: memref<16x32xf32, #tpu.memory_space<vmem>>, %arg2: memref<1x32x32xf32, #tpu.memory_space<vmem>>, %arg3: memref<1x32xf32, #tpu.memory_space<vmem>>, %arg4: memref<16x32xf32, #tpu.memory_space<vmem>>) attributes {dimension_semantics = [#tpu.dimension_semantics<parallel>], iteration_bounds = array<i64: 1>, scalar_prefetch = 0 : i64, scratch_operands = 0 : i64, tpu.core_type = #tpu.core_type<tc>, window_params = [{transform_indices = @transform_0, window_bounds = array<i64: 16, 32>}, {pipeline_mode = #tpu.pipeline_mode<synchronous>, transform_indices = @transform_1, window_bounds = array<i64: 1, 32, 32>}, {pipeline_mode = #tpu.pipeline_mode<synchronous>, transform_indices = @transform_2, window_bounds = array<i64: 1, 32>}, {transform_indices = @transform_3, window_bounds = array<i64: 16, 32>}]} {
    %c0 = arith.constant 0 : index
    %c0_0 = arith.constant 0 : index
    %0 = vector.load %arg1[%c0, %c0_0] : memref<16x32xf32, #tpu.memory_space<vmem>>, vector<16x32xf32>
    %c0_1 = arith.constant 0 : index
    %c0_2 = arith.constant 0 : index
    %c0_3 = arith.constant 0 : index
    %1 = vector.load %arg2[%c0_1, %c0_2, %c0_3] : memref<1x32x32xf32, #tpu.memory_space<vmem>>, vector<1x32x32xf32>
    %2 = vector.shape_cast %1 : vector<1x32x32xf32> to vector<32x32xf32>
    %cst = arith.constant dense<0.000000e+00> : vector<16x32xf32>
    %3 = tpu.matmul %0, %2, %cst {dimension_numbers = #tpu.dot_dimension_numbers<[1], [0], [0], [1], [0, 0, 1, 1], [], []>} : vector<16x32xf32>, vector<32x32xf32>, vector<16x32xf32> -> vector<16x32xf32>
    %c0_4 = arith.constant 0 : index
    %c0_5 = arith.constant 0 : index
    %4 = vector.load %arg3[%c0_4, %c0_5] : memref<1x32xf32, #tpu.memory_space<vmem>>, vector<1x32xf32>
    %5 = vector.broadcast %4 : vector<1x32xf32> to vector<16x32xf32>
    %6 = arith.addf %3, %5 : vector<16x32xf32>
    %c0_6 = arith.constant 0 : index
    %c0_7 = arith.constant 0 : index
    %7 = vector.load %arg4[%c0_6, %c0_7] : memref<16x32xf32, #tpu.memory_space<vmem>>, vector<16x32xf32>
    tpu.vector_store %arg4[%c0_6, %c0_7], %6 {strides = array<i32>} : memref<16x32xf32, #tpu.memory_space<vmem>>, vector<16x32xf32>,
    return
  }
  func.func @transform_0(%arg0: i32) -> (i32, i32) {
    %c0_i32 = arith.constant 0 : i32
    %c0_i32_0 = arith.constant 0 : i32
    return %arg0, %c0_i32 : i32, i32
  }
  func.func @transform_1(%arg0: i32) -> (i32, i32, i32) {
    %c0_i32 = arith.constant 0 : i32
    %c0_i32_0 = arith.constant 0 : i32
    %c0_i32_1 = arith.constant 0 : i32
    %c0_i32_2 = arith.constant 0 : i32
    return %c0_i32, %c0_i32_0, %c0_i32_1 : i32, i32, i32
  }
  func.func @transform_2(%arg0: i32) -> (i32, i32) {
    %c0_i32 = arith.constant 0 : i32
    %c0_i32_0 = arith.constant 0 : i32
    %c0_i32_1 = arith.constant 0 : i32
    return %c0_i32, %c0_i32_0 : i32, i32
  }
  func.func @transform_3(%arg0: i32) -> (i32, i32) {
    %c0_i32 = arith.constant 0 : i32
    %c0_i32_0 = arith.constant 0 : i32
    return %arg0, %c0_i32 : i32, i32
  }
}

</mosaic_0001>

<llo_original>
// kernel: block_diagonal_linear_apply.1
$region0: #{block_diagonal_linear_apply.1}
  #allocation0 [shape = 'u32[]', space=smem, size = 0x4, offset = 0x4, fixed_abs, tag = 'smem constant byte address 0x4 - core index']
  #allocation1 [shape = 'u32[72,128]{1,0:T(1,128)}', space=vmem, size = 0x9000, scoped, tag = 'internal scratch']
  %s0 = inlined_call_operand.hbm [shape: f32[16,32], index: 0, kind: input, shape index: {}]
  %s1 = inlined_call_operand.hbm [shape: f32[1,32,32], index: 1, kind: input, shape index: {}]
  %s2 = inlined_call_operand.vmem [shape: f32[1,32], index: 2, kind: input, shape index: {}]
  %s3 = inlined_call_operand.hbm [shape: f32[16,32], index: 3, kind: output, shape index: {}]
  %s4 = sld [smem:[#allocation0]]
  $region30: #{block_diagonal_linear_apply.1} parent=0
    _
  %s6 = ssub.s32 1, %s4
  %s7 = scalar_select 0, %s6, %s4
  $region1: #{block_diagonal_linear_apply.1} parent=0
    #allocation2 [shape = 'u8[8192]{0}', space=vmem, size = 0x2000, scoped, tag = 'input window, operand 0, single buffered']
    #allocation3 [shape = 's32[1]{0}', space=sflag, size = 0x4, scoped, tag = 'scoped memory for block_diagonal_linear_apply.1']
    #allocation4 [shape = 's32[1]{0}', space=sflag, size = 0x4, scoped, tag = 'scoped memory for block_diagonal_linear_apply.1']
    #allocation5 [shape = 'u8[16384]{0}', space=vmem, size = 0x4000, scoped, tag = 'input window, operand 1, single buffered']
    #allocation6 [shape = 's32[1]{0}', space=sflag, size = 0x4, scoped, tag = 'scoped memory for block_diagonal_linear_apply.1']
    #allocation7 [shape = 'u8[8192]{0}', space=vmem, size = 0x2000, scoped, tag = 'output window, operand 0, single buffered']
    %8 = vsyncpa [#allocation3], 0
    %9 = vsyncpa [#allocation6], 0
    %10 = vsyncpa [#allocation4], 0
    // Predicated region
    $region2: #{block_diagonal_linear_apply.1} parent=1 // pred_check
      _
    $region3: #{block_diagonal_linear_apply.1} parent=1 // pred_check_branch
      %12 = sbr.rel (0) target = $region5
    $region4: #{block_diagonal_linear_apply.1} parent=1 // pred_region
      %14 = vsyncadd [#allocation3], 0
      %s15 = sshll.u32 %s0, 4
      %s16 = int_to_ptr.hbm [resolvable:$true] %s15
      %s17 = sshll.u32 [#allocation2], 4
      %s18 = int_to_ptr.vmem [resolvable:$true] %s17
      %23 = dma.hbm_to_vmem [thread:$0]  %s16, 256, %s18, [#allocation3], 128, 128, 8
    $region5: #{block_diagonal_linear_apply.1} parent=1 // pred_fallthru
      _
    // Predicated region
    $region6: #{block_diagonal_linear_apply.1} parent=1 // pred_check
      _
    $region7: #{block_diagonal_linear_apply.1} parent=1 // pred_check_branch
      %25 = sbr.rel (0) target = $region9
    $region8: #{block_diagonal_linear_apply.1} parent=1 // pred_region
      %27 = vsyncadd [#allocation6], 0
      %s28 = sshll.u32 %s1, 4
      %s29 = int_to_ptr.hbm [resolvable:$true] %s28
      %s30 = sshll.u32 [#allocation5], 4
      %s31 = int_to_ptr.vmem [resolvable:$true] %s30
      %36 = dma.hbm_to_vmem [thread:$0]  %s29, 512, %s31, [#allocation6], 128, 128, 8
    $region9: #{block_diagonal_linear_apply.1} parent=1 // pred_fallthru
      _
    // Predicated region
    $region10: #{block_diagonal_linear_apply.1} parent=1 // pred_check
      _
    $region11: #{block_diagonal_linear_apply.1} parent=1 // pred_check_branch
      %38 = sbr.rel (0) target = $region13
    $region12: #{block_diagonal_linear_apply.1} parent=1 // pred_region
      _
    $region13: #{block_diagonal_linear_apply.1} parent=1 // pred_fallthru
      _
    // Predicated region
    $region14: #{block_diagonal_linear_apply.1} parent=1 // pred_check
      _
    $region15: #{block_diagonal_linear_apply.1} parent=1 // pred_check_branch
      %40 = sbr.rel (0) target = $region17
    $region16: #{block_diagonal_linear_apply.1} parent=1 // pred_region
      %42 = dma.done [#allocation3], 256
    $region17: #{block_diagonal_linear_apply.1} parent=1 // pred_fallthru
      _
    // Predicated region
    $region18: #{block_diagonal_linear_apply.1} parent=1 // pred_check
      _
    $region19: #{block_diagonal_linear_apply.1} parent=1 // pred_check_branch
      %44 = sbr.rel (0) target = $region21
    $region20: #{block_diagonal_linear_apply.1} parent=1 // pred_region
      %46 = dma.done [#allocation6], 512
    $region21: #{block_diagonal_linear_apply.1} parent=1 // pred_fallthru
      _
    %v47 = vld [vmem:[#allocation2] sm:$0xff]
    %v48 = vld [vmem:[#allocation2 + $0x8] sm:$0xff]
    %v49 = vld [vmem:[#allocation5] sm:$0xff]
    %v50 = vld [vmem:[#allocation5 + $0x8] sm:$0xff]
    %v51 = vld [vmem:[#allocation5 + $0x10] sm:$0xff]
    %v52 = vld [vmem:[#allocation5 + $0x18] sm:$0xff]
    %v53 = vld [vmem:[%s2] sm:$0x1]
    %v55 = vperm.slane %v53, 0
    %vm57 = vcmask 261120
    %v59 = vsel %vm57, %v47, 0
    %v62 = vsel %vm57, %v48, 0
    %64 = vmatpush.msra.mxu0 0.0
    %65 = vmatpush.msra.mxu0 0.0
    %66 = vmatpush.msra.mxu0 0.0
    %67 = vmatpush.msra.mxu0 0.0
    %68 = vmatpush.msra.mxu0 0.0
    %69 = vmatpush.msra.mxu0 0.0
    %70 = vmatpush.msra.mxu0 0.0
    %71 = vmatpush.msra.mxu0 0.0
    %72 = vmatpush.msra.mxu0 0.0
    %73 = vmatpush.msra.mxu0 0.0
    %74 = vmatpush.msra.mxu0 0.0
    %75 = vmatpush.msra.mxu0 0.0
    %76 = vmatpush.msra.mxu0 %v52
    %77 = vmatpush.msra.mxu0 %v51
    %78 = vmatpush.msra.mxu0 %v50
    %79 = vmatpush.msra.mxu0 %v49
    %80 = vmatmul.f32.gmra.mxu0 %v59
    %v81 = vpop.f32.mrf.mxu0
    %v82 = vadd.f32 %v55, %v81
    %83 = vmatmul.f32.gmra.mxu0 %v62
    %v84 = vpop.f32.mrf.mxu0
    %v85 = vadd.f32 %v55, %v84
    %86 = vdwg.mxu0
    %87 = vst.msk [vmem:[#allocation7] sm:$0xff] %vm57, %v82
    %88 = vst.msk [vmem:[#allocation7 + $0x8] sm:$0xff] %vm57, %v85
    // Predicated region
    $region22: #{block_diagonal_linear_apply.1} parent=1 // pred_check
      _
    $region23: #{block_diagonal_linear_apply.1} parent=1 // pred_check_branch
      %90 = sbr.rel (0) target = $region25
    $region24: #{block_diagonal_linear_apply.1} parent=1 // pred_region
      %92 = vsyncadd [#allocation4], 0
      %s93 = sshll.u32 [#allocation7], 4
      %s94 = int_to_ptr.vmem [resolvable:$true] %s93
      %s95 = sshll.u32 %s3, 4
      %s96 = int_to_ptr.hbm [resolvable:$true] %s95
      %101 = dma.vmem_to_hbm [thread:$0]  %s94, 256, %s96, [#allocation4], 128, 128, 8
    $region25: #{block_diagonal_linear_apply.1} parent=1 // pred_fallthru
      _
    // Predicated region
    $region26: #{block_diagonal_linear_apply.1} parent=1 // pred_check
      _
    $region27: #{block_diagonal_linear_apply.1} parent=1 // pred_check_branch
      %103 = sbr.rel (0) target = $region29
    $region28: #{block_diagonal_linear_apply.1} parent=1 // pred_region
      %105 = dma.done [#allocation4], 256
    $region29: #{block_diagonal_linear_apply.1} parent=1 // pred_fallthru
      _
    %106 = vsyncpa [#allocation3], 1
    %107 = vsyncpa [#allocation6], 1
    %108 = vsyncpa [#allocation4], 1

</llo_original>
